<compile_context>
chip_gen: v7x
topology: tpu7x:2x2x1
jax: 0.10.0
libtpu: 0.0.40
codegen_flags: <defaults>
</compile_context>

<pallas_src>
import functools

import jax
import jax.numpy as jnp
from jax.experimental import pallas as pl
from jax.experimental.pallas import tpu as pltpu


def _round_up(x, m):
    return (x + m - 1) // m * m


# ---------------------------------------------------------------------------
# Pallas kernel: (tm, K) x (K, N) MXU matmul with fused bias (+ ReLU) epilogue.
# K and N are fully resident (single block); grid is 1-D over M tiles.
# ---------------------------------------------------------------------------
def _matmul_bias_kernel(p_ref, w_ref, b_ref, o_ref, *, apply_relu):
    out = jnp.dot(p_ref[...], w_ref[...], preferred_element_type=jnp.float32)
    out = out + b_ref[...]
    if apply_relu:
        out = jnp.maximum(out, 0.0)
    o_ref[...] = out.astype(o_ref.dtype)


def fused_matmul_bias(patches, weight, bias, *, relu, out_dtype=jnp.float32,
                      tm_max=512):
    """relu?(patches @ weight + bias), bf16 inputs / f32 accumulation.

    grid = (Mp // tm,): only the patches tile streams; weight and bias have
    constant block indices so they are DMA'd once and kept in VMEM.
    """
    M, K = patches.shape
    N = weight.shape[1]

    # Collapse K and N into single (lane-dense) blocks.
    Kp = _round_up(K, 128)
    Np = _round_up(N, 128)

    # M tiling: big tiles (multiple of 16 for bf16 sublanes), but guarantee
    # >= 2 tiles on the parallel axis when possible (v7x has 2 TensorCores).
    tm = min(tm_max, _round_up(M, 16))
    Mp = _round_up(M, tm)
    if Mp // tm < 2 and Mp >= 32:
        tm = _round_up(Mp // 2, 16)
        Mp = _round_up(M, tm)

    p = patches.astype(jnp.bfloat16)
    if (Mp, Kp) != (M, K):
        p = jnp.pad(p, ((0, Mp - M), (0, Kp - K)))
    w = jnp.pad(weight.astype(jnp.bfloat16), ((0, Kp - K), (0, Np - N)))
    b = jnp.pad(bias.reshape(1, -1).astype(jnp.float32),
                ((0, 0), (0, Np - N)))

    kernel = functools.partial(_matmul_bias_kernel, apply_relu=relu)
    out = pl.pallas_call(
        kernel,
        out_shape=jax.ShapeDtypeStruct((Mp, Np), out_dtype),
        grid_spec=pltpu.PrefetchScalarGridSpec(
            num_scalar_prefetch=0,
            grid=(Mp // tm,),
            in_specs=[
                # streaming patches tile
                pl.BlockSpec((tm, Kp), lambda i: (i, 0)),
                # weight: constant block index -> VMEM-resident, DMA'd once
                pl.BlockSpec((Kp, Np), lambda i: (0, 0)),
                # bias: constant block index -> VMEM-resident
                pl.BlockSpec((1, Np), lambda i: (0, 0)),
            ],
            out_specs=pl.BlockSpec((tm, Np), lambda i: (i, 0)),
        ),
        compiler_params=pltpu.CompilerParams(
            dimension_semantics=("parallel",)),
    )(p, w, b)
    return out[:M, :N]


# ---------------------------------------------------------------------------
# Glue: im2col, weight reshaping, BN folding (plain JAX, fused under jit)
# ---------------------------------------------------------------------------
def im2col(x_nhwc, kh, kw, stride, pad):
    n, h, w, c = x_nhwc.shape
    xp = jnp.pad(x_nhwc, ((0, 0), (pad, pad), (pad, pad), (0, 0)))
    ho = (h + 2 * pad - kh) // stride + 1
    wo = (w + 2 * pad - kw) // stride + 1
    cols = []
    for i in range(kh):
        for j in range(kw):
            cols.append(xp[:, i:i + stride * ho:stride,
                           j:j + stride * wo:stride, :])
    patches = jnp.concatenate(cols, axis=-1)          # (n, ho, wo, kh*kw*c)
    return patches.reshape(n * ho * wo, kh * kw * c), (n, ho, wo)


def weight_to_matrix(w_oihw):
    # (Cout, Cin, KH, KW) -> (KH*KW*Cin, Cout), matching im2col row order.
    return jnp.transpose(w_oihw, (2, 3, 1, 0)).reshape(-1, w_oihw.shape[0])


def fold_bn_into_weight(w_col, conv_bias, gamma, beta, mean, var, eps=1e-5):
    # Eval-mode BN: scale folded into the weight columns, rest is additive bias.
    scale = gamma / jnp.sqrt(var + eps)
    return w_col * scale[None, :], beta + scale * (conv_bias - mean)


@jax.jit
def residual_layer_forward(x_nchw, params):
    # NCHW -> NHWC, single up-front bf16 cast (halves im2col / pad traffic).
    x = jnp.transpose(x_nchw, (0, 2, 3, 1)).astype(jnp.bfloat16)
    cout = params["w1"].shape[0]

    # --- mainpath conv1: 3x3 stride 2 pad 1 + BN + ReLU (one fused matmul) ---
    p1, (nb, ho, wo) = im2col(x, 3, 3, stride=2, pad=1)
    w1, b1 = fold_bn_into_weight(weight_to_matrix(params["w1"]), params["b1"],
                                 params["g1"], params["be1"],
                                 params["m1"], params["v1"])
    h1 = fused_matmul_bias(p1, w1, b1, relu=True, out_dtype=jnp.bfloat16)
    h1_nhwc = h1.reshape(nb, ho, wo, cout)

    # --- conv2 (3x3 s1 p1 + BN) fused with the shortcut (1x1 s2 + BN):
    #     concatenate patches/weights along K so the residual add happens
    #     inside one MXU reduction, then ReLU in the epilogue ---
    p2, _ = im2col(h1_nhwc, 3, 3, stride=1, pad=1)
    xs = x[:, ::2, ::2, :].reshape(nb * ho * wo, x.shape[-1])
    w2, b2 = fold_bn_into_weight(weight_to_matrix(params["w2"]), params["b2"],
                                 params["g2"], params["be2"],
                                 params["m2"], params["v2"])
    ws, bs = fold_bn_into_weight(weight_to_matrix(params["ws"]), params["bs"],
                                 params["gs"], params["bes"],
                                 params["ms"], params["vs"])
    p_cat = jnp.concatenate([p2, xs], axis=1)
    w_cat = jnp.concatenate([w2, ws], axis=0)
    out = fused_matmul_bias(p_cat, w_cat, b2 + bs, relu=True,
                            out_dtype=jnp.float32)

    out = out.reshape(nb, ho, wo, cout)
    return jnp.transpose(out, (0, 3, 1, 2))  # back to NCHW


# ---------------------------------------------------------------------------
# Pure-JAX reference (f32, for correctness check)
# ---------------------------------------------------------------------------
def _conv_ref(x_nhwc, w_oihw, b, stride, pad):
    w_hwio = jnp.transpose(w_oihw, (2, 3, 1, 0))
    y = jax.lax.conv_general_dilated(
        x_nhwc, w_hwio, (stride, stride), [(pad, pad), (pad, pad)],
        dimension_numbers=("NHWC", "HWIO", "NHWC"))
    return y + b


def _bn_ref(y, g, be, m, v, eps=1e-5):
    return g * (y - m) / jnp.sqrt(v + eps) + be


def residual_layer_ref(x_nchw, p):
    x = jnp.transpose(x_nchw, (0, 2, 3, 1))
    h = _bn_ref(_conv_ref(x, p["w1"], p["b1"], 2, 1),
                p["g1"], p["be1"], p["m1"], p["v1"])
    h = jnp.maximum(h, 0.0)
    h = _bn_ref(_conv_ref(h, p["w2"], p["b2"], 1, 1),
                p["g2"], p["be2"], p["m2"], p["v2"])
    r = _bn_ref(_conv_ref(x, p["ws"], p["bs"], 2, 0),
                p["gs"], p["bes"], p["ms"], p["vs"])
    out = jnp.maximum(h + r, 0.0)
    return jnp.transpose(out, (0, 3, 1, 2))


# ---------------------------------------------------------------------------
if __name__ == "__main__":
    key = jax.random.PRNGKey(0)
    Cin, Cout, N, H, W = 4, 8, 2, 16, 16
    ks = jax.random.split(key, 20)

    x = jax.random.normal(ks[0], (N, Cin, H, W), jnp.float32)

    def bn_params(k0, k1, k2, k3, c):
        return dict(
            gamma=1.0 + 0.1 * jax.random.normal(k0, (c,), jnp.float32),
            beta=0.1 * jax.random.normal(k1, (c,), jnp.float32),
            mean=0.1 * jax.random.normal(k2, (c,), jnp.float32),
            var=0.5 + jax.random.uniform(k3, (c,), jnp.float32),
        )

    bn1 = bn_params(ks[3], ks[4], ks[5], ks[6], Cout)
    bn2 = bn_params(ks[9], ks[10], ks[11], ks[12], Cout)
    bns = bn_params(ks[15], ks[16], ks[17], ks[18], Cout)

    params = dict(
        w1=0.2 * jax.random.normal(ks[1], (Cout, Cin, 3, 3), jnp.float32),
        b1=0.1 * jax.random.normal(ks[2], (Cout,), jnp.float32),
        g1=bn1["gamma"], be1=bn1["beta"], m1=bn1["mean"], v1=bn1["var"],
        w2=0.2 * jax.random.normal(ks[7], (Cout, Cout, 3, 3), jnp.float32),
        b2=0.1 * jax.random.normal(ks[8], (Cout,), jnp.float32),
        g2=bn2["gamma"], be2=bn2["beta"], m2=bn2["mean"], v2=bn2["var"],
        ws=0.2 * jax.random.normal(ks[13], (Cout, Cin, 1, 1), jnp.float32),
        bs=0.1 * jax.random.normal(ks[14], (Cout,), jnp.float32),
        gs=bns["gamma"], bes=bns["beta"], ms=bns["mean"], vs=bns["var"],
    )

    out = jax.block_until_ready(residual_layer_forward(x, params))
    ref = jax.block_until_ready(residual_layer_ref(x, params))

    assert out.shape == (N, Cout, H // 2, W // 2), out.shape
    # Tightened vs v1 (1e-1 -> 5e-2).  Residual error budget: bf16 inputs +
    # a bf16 round-trip of h1 between the two convs, f32 MXU accumulation.
    assert jnp.allclose(out, ref, atol=5e-2, rtol=5e-2), \
        float(jnp.max(jnp.abs(out - ref)))
    print("KERNEL_OK")
</pallas_src>

<mosaic_0001>
module attributes {stable_mosaic.version = 11 : i64} {
  func.func @_matmul_bias_kernel(%arg0: i32, %arg1: memref<64x128xbf16, #tpu.memory_space<vmem>>, %arg2: memref<128x128xbf16, #tpu.memory_space<vmem>>, %arg3: memref<1x128xf32, #tpu.memory_space<vmem>>, %arg4: memref<64x128xbf16, #tpu.memory_space<vmem>>) attributes {dimension_semantics = [#tpu.dimension_semantics<parallel>], iteration_bounds = array<i64: 2>, scalar_prefetch = 0 : i64, scratch_operands = 0 : i64, tpu.core_type = #tpu.core_type<tc>, window_params = [{transform_indices = @transform_0, window_bounds = array<i64: 64, 128>}, {pipeline_mode = #tpu.pipeline_mode<synchronous>, transform_indices = @transform_1, window_bounds = array<i64: 128, 128>}, {pipeline_mode = #tpu.pipeline_mode<synchronous>, transform_indices = @transform_2, window_bounds = array<i64: 1, 128>}, {transform_indices = @transform_3, window_bounds = array<i64: 64, 128>}]} {
    %c0 = arith.constant 0 : index
    %c0_0 = arith.constant 0 : index
    %0 = vector.load %arg1[%c0, %c0_0] : memref<64x128xbf16, #tpu.memory_space<vmem>>, vector<64x128xbf16>
    %c0_1 = arith.constant 0 : index
    %c0_2 = arith.constant 0 : index
    %1 = vector.load %arg2[%c0_1, %c0_2] : memref<128x128xbf16, #tpu.memory_space<vmem>>, vector<128x128xbf16>
    %cst = arith.constant dense<0.000000e+00> : vector<64x128xf32>
    %2 = tpu.matmul %0, %1, %cst {dimension_numbers = #tpu.dot_dimension_numbers<[1], [0], [0], [1], [0, 0, 1, 1], [], []>} : vector<64x128xbf16>, vector<128x128xbf16>, vector<64x128xf32> -> vector<64x128xf32>
    %c0_3 = arith.constant 0 : index
    %c0_4 = arith.constant 0 : index
    %3 = vector.load %arg3[%c0_3, %c0_4] : memref<1x128xf32, #tpu.memory_space<vmem>>, vector<1x128xf32>
    %4 = vector.broadcast %3 : vector<1x128xf32> to vector<64x128xf32>
    %5 = arith.addf %2, %4 : vector<64x128xf32>
    %cst_5 = arith.constant 0.000000e+00 : f32
    %6 = vector.broadcast %cst_5 : f32 to vector<64x128xf32>
    %7 = arith.maximumf %5, %6 : vector<64x128xf32>
    %8 = arith.truncf %7 : vector<64x128xf32> to vector<64x128xbf16>
    %c0_6 = arith.constant 0 : index
    %c0_7 = arith.constant 0 : index
    %9 = vector.load %arg4[%c0_6, %c0_7] : memref<64x128xbf16, #tpu.memory_space<vmem>>, vector<64x128xbf16>
    tpu.vector_store %arg4[%c0_6, %c0_7], %8 {strides = array<i32>} : memref<64x128xbf16, #tpu.memory_space<vmem>>, vector<64x128xbf16>,
    return
  }
  func.func @transform_0(%arg0: i32) -> (i32, i32) {
    %c0_i32 = arith.constant 0 : i32
    %c0_i32_0 = arith.constant 0 : i32
    return %arg0, %c0_i32 : i32, i32
  }
  func.func @transform_1(%arg0: i32) -> (i32, i32) {
    %c0_i32 = arith.constant 0 : i32
    %c0_i32_0 = arith.constant 0 : i32
    %c0_i32_1 = arith.constant 0 : i32
    return %c0_i32, %c0_i32_0 : i32, i32
  }
  func.func @transform_2(%arg0: i32) -> (i32, i32) {
    %c0_i32 = arith.constant 0 : i32
    %c0_i32_0 = arith.constant 0 : i32
    %c0_i32_1 = arith.constant 0 : i32
    return %c0_i32, %c0_i32_0 : i32, i32
  }
  func.func @transform_3(%arg0: i32) -> (i32, i32) {
    %c0_i32 = arith.constant 0 : i32
    %c0_i32_0 = arith.constant 0 : i32
    return %arg0, %c0_i32 : i32, i32
  }
}

module attributes {stable_mosaic.version = 11 : i64} {
  func.func @_matmul_bias_kernel(%arg0: i32, %arg1: memref<64x128xbf16, #tpu.memory_space<vmem>>, %arg2: memref<128x128xbf16, #tpu.memory_space<vmem>>, %arg3: memref<1x128xf32, #tpu.memory_space<vmem>>, %arg4: memref<64x128xf32, #tpu.memory_space<vmem>>) attributes {dimension_semantics = [#tpu.dimension_semantics<parallel>], iteration_bounds = array<i64: 2>, scalar_prefetch = 0 : i64, scratch_operands = 0 : i64, tpu.core_type = #tpu.core_type<tc>, window_params = [{transform_indices = @transform_0, window_bounds = array<i64: 64, 128>}, {pipeline_mode = #tpu.pipeline_mode<synchronous>, transform_indices = @transform_1, window_bounds = array<i64: 128, 128>}, {pipeline_mode = #tpu.pipeline_mode<synchronous>, transform_indices = @transform_2, window_bounds = array<i64: 1, 128>}, {transform_indices = @transform_3, window_bounds = array<i64: 64, 128>}]} {
    %c0 = arith.constant 0 : index
    %c0_0 = arith.constant 0 : index
    %0 = vector.load %arg1[%c0, %c0_0] : memref<64x128xbf16, #tpu.memory_space<vmem>>, vector<64x128xbf16>
    %c0_1 = arith.constant 0 : index
    %c0_2 = arith.constant 0 : index
    %1 = vector.load %arg2[%c0_1, %c0_2] : memref<128x128xbf16, #tpu.memory_space<vmem>>, vector<128x128xbf16>
    %cst = arith.constant dense<0.000000e+00> : vector<64x128xf32>
    %2 = tpu.matmul %0, %1, %cst {dimension_numbers = #tpu.dot_dimension_numbers<[1], [0], [0], [1], [0, 0, 1, 1], [], []>} : vector<64x128xbf16>, vector<128x128xbf16>, vector<64x128xf32> -> vector<64x128xf32>
    %c0_3 = arith.constant 0 : index
    %c0_4 = arith.constant 0 : index
    %3 = vector.load %arg3[%c0_3, %c0_4] : memref<1x128xf32, #tpu.memory_space<vmem>>, vector<1x128xf32>
    %4 = vector.broadcast %3 : vector<1x128xf32> to vector<64x128xf32>
    %5 = arith.addf %2, %4 : vector<64x128xf32>
    %cst_5 = arith.constant 0.000000e+00 : f32
    %6 = vector.broadcast %cst_5 : f32 to vector<64x128xf32>
    %7 = arith.maximumf %5, %6 : vector<64x128xf32>
    %c0_6 = arith.constant 0 : index
    %c0_7 = arith.constant 0 : index
    %8 = vector.load %arg4[%c0_6, %c0_7] : memref<64x128xf32, #tpu.memory_space<vmem>>, vector<64x128xf32>
    tpu.vector_store %arg4[%c0_6, %c0_7], %7 {strides = array<i32>} : memref<64x128xf32, #tpu.memory_space<vmem>>, vector<64x128xf32>,
    return
  }
  func.func @transform_0(%arg0: i32) -> (i32, i32) {
    %c0_i32 = arith.constant 0 : i32
    %c0_i32_0 = arith.constant 0 : i32
    return %arg0, %c0_i32 : i32, i32
  }
  func.func @transform_1(%arg0: i32) -> (i32, i32) {
    %c0_i32 = arith.constant 0 : i32
    %c0_i32_0 = arith.constant 0 : i32
    %c0_i32_1 = arith.constant 0 : i32
    return %c0_i32, %c0_i32_0 : i32, i32
  }
  func.func @transform_2(%arg0: i32) -> (i32, i32) {
    %c0_i32 = arith.constant 0 : i32
    %c0_i32_0 = arith.constant 0 : i32
    %c0_i32_1 = arith.constant 0 : i32
    return %c0_i32, %c0_i32_0 : i32, i32
  }
  func.func @transform_3(%arg0: i32) -> (i32, i32) {
    %c0_i32 = arith.constant 0 : i32
    %c0_i32_0 = arith.constant 0 : i32
    return %arg0, %c0_i32 : i32, i32
  }
}

</mosaic_0001>

<llo_original>
// kernel: residual_layer_forward.2
$region0: #{residual_layer_forward.2}
  #allocation0 [shape = 'u32[]', space=smem, size = 0x4, offset = 0x4, fixed_abs, tag = 'smem constant byte address 0x4 - core index']
  #allocation1 [shape = 'u32[144,128]{1,0:T(1,128)}', space=vmem, size = 0x12000, scoped, tag = 'internal scratch']
  %s0 = inlined_call_operand.vmem [shape: bf16[128,128], index: 0, kind: input, shape index: {}]
  %s1 = inlined_call_operand.vmem [shape: bf16[128,128], index: 1, kind: input, shape index: {}]
  %s2 = inlined_call_operand.vmem [shape: f32[1,128], index: 2, kind: input, shape index: {}]
  %s3 = inlined_call_operand.vmem [shape: bf16[128,128], index: 3, kind: output, shape index: {}]
  %s4 = sld [smem:[#allocation0]]
  $region45: #{residual_layer_forward.2} parent=0
    _
  %s6 = ssub.s32 1, %s4
  %s7 = scalar_select 0, %s6, %s4
  loop: start=0, step=1, limit=4
  $region2: #{residual_layer_forward.2} parent=0 // loop_pre_header
    _
  $region3: #{residual_layer_forward.2} parent=0 // loop_header
    %s9 = sphi 0, %s13
    %p10 = scmp.ge.s32.totalorder %s9, 4
    %s19 = sphi 0, %s21
    %s22 = sphi 0, %s19
    %s23 = sphi 0, %s22
    %s39 = sphi 0, %s23
    %s43 = sphi 0, %s43
    %s45 = sphi 0, %s43
    %s46 = sphi 0, %s45
    %s60 = sphi 0, %s46
    %s64 = sphi 0, %s64
    %s66 = sphi 0, %s64
    %s67 = sphi 0, %s66
    %s81 = sphi 0, %s67
    %s87 = sphi 0, %s89
    %s90 = sphi 0, %s87
    %s91 = sphi 0, %s90
    %s107 = sphi 0, %s91
  $region4: #{residual_layer_forward.2} parent=0 // loop_header_branch
    %12 = sbr.rel (%p10) target = $region8
  $region5: #{residual_layer_forward.2} parent=0 // loop_body
    %s14 = ssub.s32 %s9, 1
    %s15 = ssub.s32 %s9, 2
    %s16 = sadd.s32 %s9, 1
    %s17 = ssub.s32 %s9, %s16
    %p18 = scmp.eq.s32.totalorder %s17, 0
    %s20 = sadd.s32 %s19, 1
    %s21 = scalar_select %p18, %s19, %s20
    %p24 = pneg %p18
    %p25 = scmp.eq.s32.totalorder %s9, 1
    %p26 = por %p24, %p25
    %p27 = scmp.ne.s32.totalorder %s19, %s22
    %p28 = scmp.eq.s32.totalorder %s9, 0
    %p29 = por %p27, %p28
    %p30 = scmp.ne.s32.totalorder %s19, %s22
    %p31 = scmp.eq.s32.totalorder %s14, 1
    %p32 = por %p30, %p31
    %p33 = scmp.ne.s32.totalorder %s22, %s23
    %p34 = scmp.eq.s32.totalorder %s14, 0
    %p35 = por %p33, %p34
    %p36 = scmp.ne.s32.totalorder %s22, %s23
    %p37 = scmp.eq.s32.totalorder %s15, 1
    %p38 = por %p36, %p37
    %p40 = scmp.ne.s32.totalorder %s23, %s39
    %p41 = scmp.eq.s32.totalorder %s15, 0
    %p42 = por %p40, %p41
    %s44 = sadd.s32 %s43, 1
    %p47 = scmp.eq.s32.totalorder %s9, 1
    %p48 = scmp.ne.s32.totalorder %s43, %s45
    %p49 = scmp.eq.s32.totalorder %s9, 0
    %p50 = por %p48, %p49
    %p51 = scmp.ne.s32.totalorder %s43, %s45
    %p52 = scmp.eq.s32.totalorder %s14, 1
    %p53 = por %p51, %p52
    %p54 = scmp.ne.s32.totalorder %s45, %s46
    %p55 = scmp.eq.s32.totalorder %s14, 0
    %p56 = por %p54, %p55
    %p57 = scmp.ne.s32.totalorder %s45, %s46
    %p58 = scmp.eq.s32.totalorder %s15, 1
    %p59 = por %p57, %p58
    %p61 = scmp.ne.s32.totalorder %s46, %s60
    %p62 = scmp.eq.s32.totalorder %s15, 0
    %p63 = por %p61, %p62
    %s65 = sadd.s32 %s64, 1
    %p68 = scmp.eq.s32.totalorder %s9, 1
    %p69 = scmp.ne.s32.totalorder %s64, %s66
    %p70 = scmp.eq.s32.totalorder %s9, 0
    %p71 = por %p69, %p70
    %p72 = scmp.ne.s32.totalorder %s64, %s66
    %p73 = scmp.eq.s32.totalorder %s14, 1
    %p74 = por %p72, %p73
    %p75 = scmp.ne.s32.totalorder %s66, %s67
    %p76 = scmp.eq.s32.totalorder %s14, 0
    %p77 = por %p75, %p76
    %p78 = scmp.ne.s32.totalorder %s66, %s67
    %p79 = scmp.eq.s32.totalorder %s15, 1
    %p80 = por %p78, %p79
    %p82 = scmp.ne.s32.totalorder %s67, %s81
    %p83 = scmp.eq.s32.totalorder %s15, 0
    %p84 = por %p82, %p83
    %s85 = ssub.s32 %s9, %s16
    %p86 = scmp.eq.s32.totalorder %s85, 0
    %s88 = sadd.s32 %s87, 1
    %s89 = scalar_select %p86, %s87, %s88
    %p92 = pneg %p86
    %p93 = scmp.eq.s32.totalorder %s9, 1
    %p94 = por %p92, %p93
    %p95 = scmp.ne.s32.totalorder %s87, %s90
    %p96 = scmp.eq.s32.totalorder %s9, 0
    %p97 = por %p95, %p96
    %p98 = scmp.ne.s32.totalorder %s87, %s90
    %p99 = scmp.eq.s32.totalorder %s14, 1
    %p100 = por %p98, %p99
    %p101 = scmp.ne.s32.totalorder %s90, %s91
    %p102 = scmp.eq.s32.totalorder %s14, 0
    %p103 = por %p101, %p102
    %p104 = scmp.ne.s32.totalorder %s90, %s91
    %p105 = scmp.eq.s32.totalorder %s15, 1
    %p106 = por %p104, %p105
    %p108 = scmp.ne.s32.totalorder %s91, %s107
    %p109 = scmp.eq.s32.totalorder %s15, 0
    %p110 = por %p108, %p109
    %p111 = scmp.le.s32.totalorder 1, %s9
    %p112 = scmp.lt.s32.totalorder %s9, 3
    %p113 = pnand %p111, %p112
    %p114 = pneg %p113
    // Predicated region
    $region9: #{residual_layer_forward.2} parent=5 // pred_check
      _
    $region10: #{residual_layer_forward.2} parent=5 // pred_check_branch
      %116 = sbr.rel (%p113) target = $region12
    $region11: #{residual_layer_forward.2} parent=5 // pred_region
      %s117 = ssub.s32 %s9, 1
      // Predicated region
      $region13: #{residual_layer_forward.2} parent=11 // pred_check
        %p118 = pneg %p56
      $region14: #{residual_layer_forward.2} parent=11 // pred_check_branch
        %120 = sbr.rel (%p118) target = $region16
      $region15: #{residual_layer_forward.2} parent=11 // pred_region
        _
      $region16: #{residual_layer_forward.2} parent=11 // pred_fallthru
        _
      // Predicated region
      $region17: #{residual_layer_forward.2} parent=11 // pred_check
        %p121 = pneg %p77
      $region18: #{residual_layer_forward.2} parent=11 // pred_check_branch
        %123 = sbr.rel (%p121) target = $region20
      $region19: #{residual_layer_forward.2} parent=11 // pred_region
        _
      $region20: #{residual_layer_forward.2} parent=11 // pred_fallthru
        _
    $region12: #{residual_layer_forward.2} parent=5 // pred_fallthru
      _
    %p124 = scmp.lt.s32.totalorder %s9, 2
    // Predicated region
    $region21: #{residual_layer_forward.2} parent=5 // pred_check
      %p125 = pneg %p124
    $region22: #{residual_layer_forward.2} parent=5 // pred_check_branch
      %127 = sbr.rel (%p125) target = $region24
    $region23: #{residual_layer_forward.2} parent=5 // pred_region
      // Predicated region
      $region25: #{residual_layer_forward.2} parent=23 // pred_check
        %p128 = pneg %p29
      $region26: #{residual_layer_forward.2} parent=23 // pred_check_branch
        %130 = sbr.rel (%p128) target = $region28
      $region27: #{residual_layer_forward.2} parent=23 // pred_region
        %s131 = smul.u32 8, %s9
        %p132 = scmp.lt.s32.totalorder %s131, 15
        %s133 = scalar_select %p132, %s131, 15
        %s134 = smul.addr %s133, 4
        %s135 = scalar_lea.vmem %s0, %s134
        %s136 = smul.u32 8, %s9
      $region28: #{residual_layer_forward.2} parent=23 // pred_fallthru
        _
    $region24: #{residual_layer_forward.2} parent=5 // pred_fallthru
      _
    %p137 = scmp.le.s32.totalorder 1, %s9
    %p138 = scmp.lt.s32.totalorder %s9, 3
    %p139 = pnand %p137, %p138
    %p140 = pneg %p139
    // Predicated region
    $region29: #{residual_layer_forward.2} parent=5 // pred_check
      _
    $region30: #{residual_layer_forward.2} parent=5 // pred_check_branch
      %142 = sbr.rel (%p139) target = $region32
    $region31: #{residual_layer_forward.2} parent=5 // pred_region
      %s143 = ssub.s32 %s9, 1
      %s144 = smul.u32 8, %s14
      %p145 = scmp.lt.s32.totalorder %s144, 15
      %s146 = scalar_select %p145, %s144, 15
      %s147 = smul.addr %s146, 4
      %s148 = scalar_lea.vmem %s0, %s147
      %p149 = pneg %p35
      %p150 = pneg %p32
      %p151 = pneg %p56
      %p152 = pneg %p53
      %p153 = pneg %p77
      %p154 = pneg %p74
      %p155 = pneg %p103
      %p156 = pneg %p100
      %s157 = smul.u32 8, %s14
      %p158 = scmp.lt.s32.totalorder %s157, 15
      %s159 = scalar_select %p158, %s157, 15
      %s160 = smul.addr %s159, 4
      %s161 = scalar_lea.vmem %s3, %s160
      %s162 = smul.u32 8, %s14
      %p163 = scmp.lt.s32.totalorder %s162, 15
      %s164 = scalar_select %p163, %s162, 15
      %s165 = smul.addr %s164, 4
      %s166 = scalar_lea.vmem %s0, %s165
      %s167 = smul.u32 8, %s14
      %s168 = smul.u32 8, %s14
      %p169 = scmp.lt.s32.totalorder %s168, 15
      %s170 = scalar_select %p169, %s168, 15
      %s171 = smul.addr %s170, 4
      %s172 = scalar_lea.vmem %s3, %s171
      %s173 = smul.u32 8, %s14
      %v175 = vld [vmem:[%s166] sm:$0xf]
      %v176 = vld [vmem:[%s166 + $0x4] sm:$0xf]
      %v177 = vld [vmem:[%s166 + $0x8] sm:$0xf]
      %v178 = vld [vmem:[%s166 + $0xc] sm:$0xf]
      %v179 = vld [vmem:[%s166 + $0x10] sm:$0xf]
      %v180 = vld [vmem:[%s166 + $0x14] sm:$0xf]
      %v181 = vld [vmem:[%s166 + $0x18] sm:$0xf]
      %v182 = vld [vmem:[%s166 + $0x1c] sm:$0xf]
      %v183 = vld [vmem:[%s1] sm:$0xf]
      %v184 = vld [vmem:[%s1 + $0x4] sm:$0xf]
      %v185 = vld [vmem:[%s1 + $0x8] sm:$0xf]
      %v186 = vld [vmem:[%s1 + $0xc] sm:$0xf]
      %v187 = vld [vmem:[%s1 + $0x10] sm:$0xf]
      %v188 = vld [vmem:[%s1 + $0x14] sm:$0xf]
      %v189 = vld [vmem:[%s1 + $0x18] sm:$0xf]
      %v190 = vld [vmem:[%s1 + $0x1c] sm:$0xf]
      %v191 = vld [vmem:[%s1 + $0x20] sm:$0xf]
      %v192 = vld [vmem:[%s1 + $0x24] sm:$0xf]
      %v193 = vld [vmem:[%s1 + $0x28] sm:$0xf]
      %v194 = vld [vmem:[%s1 + $0x2c] sm:$0xf]
      %v195 = vld [vmem:[%s1 + $0x30] sm:$0xf]
      %v196 = vld [vmem:[%s1 + $0x34] sm:$0xf]
      %v197 = vld [vmem:[%s1 + $0x38] sm:$0xf]
      %v198 = vld [vmem:[%s1 + $0x3c] sm:$0xf]
      %v199 = vld [vmem:[%s2] sm:$0x1]
      %v201 = vlaneseq
      %v202 = vshrl.u32 %v201, 7
      %v203 = vsub.s32 0, %v202
      %v204 = vrot.slane %v199, %v203
      %v214 = vunpack.c.l.b16 %v175
      %v215 = vunpack.c.l.b16 %v176
      %v216 = vunpack.c.l.b16 %v177
      %v217 = vunpack.c.l.b16 %v178
      %v218 = vunpack.c.l.b16 %v179
      %v219 = vunpack.c.l.b16 %v180
      %v220 = vunpack.c.l.b16 %v181
      %v221 = vunpack.c.l.b16 %v182
      %v222 = vpack.c.b16 %v215, %v214
      %v223 = vpack.c.b16 %v217, %v216
      %v224 = vpack.c.b16 %v219, %v218
      %v225 = vpack.c.b16 %v221, %v220
      %v246 = vunpack.c.l.b16 %v183
      %v247 = vunpack.c.l.b16 %v184
      %v248 = vunpack.c.l.b16 %v185
      %v249 = vunpack.c.l.b16 %v186
      %v250 = vunpack.c.l.b16 %v187
      %v251 = vunpack.c.l.b16 %v188
      %v252 = vunpack.c.l.b16 %v189
      %v253 = vunpack.c.l.b16 %v190
      %v254 = vunpack.c.l.b16 %v191
      %v255 = vunpack.c.l.b16 %v192
      %v256 = vunpack.c.l.b16 %v193
      %v257 = vunpack.c.l.b16 %v194
      %v258 = vunpack.c.l.b16 %v195
      %v259 = vunpack.c.l.b16 %v196
      %v260 = vunpack.c.l.b16 %v197
      %v261 = vunpack.c.l.b16 %v198
      %v262 = vpack.c.b16 %v247, %v246
      %v263 = vpack.c.b16 %v249, %v248
      %v264 = vpack.c.b16 %v251, %v250
      %v265 = vpack.c.b16 %v253, %v252
      %v266 = vpack.c.b16 %v255, %v254
      %v267 = vpack.c.b16 %v257, %v256
      %v268 = vpack.c.b16 %v259, %v258
      %v269 = vpack.c.b16 %v261, %v260
      %278 = vmatprep.subr.bf16.mxu0 0
      %279 = vmatpush1.bf16.msra.mxu0 %v262
      %280 = vmatprep.subr.bf16.mxu0 0
      %281 = vmatpush1.bf16.msra.mxu0 %v263
      %282 = vmatprep.subr.bf16.mxu0 0
      %283 = vmatpush1.bf16.msra.mxu0 %v264
      %284 = vmatprep.subr.bf16.mxu0 0
      %285 = vmatpush1.bf16.msra.mxu0 %v265
      %286 = vmatprep.subr.bf16.mxu0 0
      %287 = vmatpush1.bf16.msra.mxu0 %v266
      %288 = vmatprep.subr.bf16.mxu0 0
      %289 = vmatpush1.bf16.msra.mxu0 %v267
      %290 = vmatprep.subr.bf16.mxu0 0
      %291 = vmatpush1.bf16.msra.mxu0 %v268
      %292 = vmatprep.subr.bf16.mxu0 0
      %293 = vmatpush1.bf16.msra.mxu0 %v269
      %294 = vmatprep.subr.bf16.mxu0 0
      %295 = vmatpush1.bf16.msra.mxu0 0
      %296 = vmatprep.subr.bf16.mxu0 0
      %297 = vmatpush1.bf16.msra.mxu0 0
      %298 = vmatprep.subr.bf16.mxu0 0
      %299 = vmatpush1.bf16.msra.mxu0 0
      %300 = vmatprep.subr.bf16.mxu0 0
      %301 = vmatpush1.bf16.msra.mxu0 0
      %302 = vmatprep.subr.bf16.mxu0 0
      %303 = vmatpush1.bf16.msra.mxu0 0
      %304 = vmatprep.subr.bf16.mxu0 0
      %305 = vmatpush1.bf16.msra.mxu0 0
      %306 = vmatprep.subr.bf16.mxu0 0
      %307 = vmatpush1.bf16.msra.mxu0 0
      %308 = vmatprep.subr.bf16.mxu0 0
      %309 = vmatpush1.bf16.msra.mxu0 0
      %310 = vmatprep.mubr.bf16.mxu0 0
      %311 = vmatmul.mubr.bf16.gmra.mrb[0].mxu0 %v222
      %v312 = vpop.f32.mrb[0].mxu0
      %v313 = vadd.f32 %v204, %v312
      %v314 = vpop.f32.mrb[0].mxu0
      %v315 = vpop.f32.mrb[0].mxu0
      %v316 = vadd.f32 %v204, %v315
      %v317 = vpop.f32.mrb[0].mxu0
      %318 = vmatprep.mubr.bf16.mxu0 0
      %319 = vmatmul.mubr.bf16.gmra.mrb[0].mxu0 %v223
      %v320 = vpop.f32.mrb[0].mxu0
      %v321 = vadd.f32 %v204, %v320
      %v322 = vpop.f32.mrb[0].mxu0
      %v323 = vpop.f32.mrb[0].mxu0
      %v324 = vadd.f32 %v204, %v323
      %v325 = vpop.f32.mrb[0].mxu0
      %326 = vmatprep.mubr.bf16.mxu0 0
      %327 = vmatmul.mubr.bf16.gmra.mrb[0].mxu0 %v224
      %v328 = vpop.f32.mrb[0].mxu0
      %v329 = vadd.f32 %v204, %v328
      %v330 = vpop.f32.mrb[0].mxu0
      %v331 = vpop.f32.mrb[0].mxu0
      %v332 = vadd.f32 %v204, %v331
      %v333 = vpop.f32.mrb[0].mxu0
      %334 = vmatprep.mubr.bf16.mxu0 0
      %335 = vmatmul.mubr.bf16.gmra.mrb[0].mxu0 %v225
      %v336 = vpop.f32.mrb[0].mxu0
      %v337 = vadd.f32 %v204, %v336
      %v338 = vpop.f32.mrb[0].mxu0
      %v339 = vpop.f32.mrb[0].mxu0
      %v340 = vadd.f32 %v204, %v339
      %v341 = vpop.f32.mrb[0].mxu0
      %342 = vdwg.mxu0
      %v343 = vmax.f32 %v313, 0.0
      %v344 = vmax.f32 %v316, 0.0
      %v345 = vmax.f32 %v321, 0.0
      %v346 = vmax.f32 %v324, 0.0
      %v347 = vmax.f32 %v329, 0.0
      %v348 = vmax.f32 %v332, 0.0
      %v349 = vmax.f32 %v337, 0.0
      %v350 = vmax.f32 %v340, 0.0
      %v351 = vpack.c.bf16 %v344, %v343
      %v352 = vpack.c.bf16 %v346, %v345
      %v353 = vpack.c.bf16 %v348, %v347
      %v354 = vpack.c.bf16 %v350, %v349
      %v359 = vunpack.c.l.b16 %v351
      %v360 = vunpack.c.h.b16 %v351
      %v361 = vunpack.c.l.b16 %v352
      %v362 = vunpack.c.h.b16 %v352
      %v363 = vunpack.c.l.b16 %v353
      %v364 = vunpack.c.h.b16 %v353
      %v365 = vunpack.c.l.b16 %v354
      %v366 = vunpack.c.h.b16 %v354
      %v367 = vpack.c.b16 %v359, %v359
      %v368 = vpack.c.b16 %v360, %v360
      %v369 = vpack.c.b16 %v361, %v361
      %v370 = vpack.c.b16 %v362, %v362
      %v371 = vpack.c.b16 %v363, %v363
      %v372 = vpack.c.b16 %v364, %v364
      %v373 = vpack.c.b16 %v365, %v365
      %v374 = vpack.c.b16 %v366, %v366
      %383 = vst [vmem:[%s172] sm:$0xf] %v367
      %384 = vst [vmem:[%s172 + $0x4] sm:$0xf] %v368
      %385 = vst [vmem:[%s172 + $0x8] sm:$0xf] %v369
      %386 = vst [vmem:[%s172 + $0xc] sm:$0xf] %v370
      %387 = vst [vmem:[%s172 + $0x10] sm:$0xf] %v371
      %388 = vst [vmem:[%s172 + $0x14] sm:$0xf] %v372
      %389 = vst [vmem:[%s172 + $0x18] sm:$0xf] %v373
      %390 = vst [vmem:[%s172 + $0x1c] sm:$0xf] %v374
      %s391 = smul.u32 8, %s14
      %p392 = scmp.lt.s32.totalorder %s391, 15
      %s393 = scalar_select %p392, %s391, 15
      %s394 = smul.addr %s393, 4
      %s395 = scalar_lea.vmem %s3, %s394
      // Predicated region
      $region33: #{residual_layer_forward.2} parent=31 // pred_check
        %p396 = pneg %p100
      $region34: #{residual_layer_forward.2} parent=31 // pred_check_branch
        %398 = sbr.rel (%p396) target = $region36
      $region35: #{residual_layer_forward.2} parent=31 // pred_region
        %s399 = smul.u32 8, %s14
      $region36: #{residual_layer_forward.2} parent=31 // pred_fallthru
        _
    $region32: #{residual_layer_forward.2} parent=5 // pred_fallthru
      _
    %p400 = scmp.le.s32.totalorder 2, %s9
    // Predicated region
    $region37: #{residual_layer_forward.2} parent=5 // pred_check
      %p401 = pneg %p400
    $region38: #{residual_layer_forward.2} parent=5 // pred_check_branch
      %403 = sbr.rel (%p401) target = $region40
    $region39: #{residual_layer_forward.2} parent=5 // pred_region
      %s404 = ssub.s32 %s9, 2
      // Predicated region
      $region41: #{residual_layer_forward.2} parent=39 // pred_check
        %p405 = pneg %p106
      $region42: #{residual_layer_forward.2} parent=39 // pred_check_branch
        %407 = sbr.rel (%p405) target = $region44
      $region43: #{residual_layer_forward.2} parent=39 // pred_region
        %s408 = smul.u32 8, %s15
        %p409 = scmp.lt.s32.totalorder %s408, 15
        %s410 = scalar_select %p409, %s408, 15
        %s411 = smul.addr %s410, 4
        %s412 = scalar_lea.vmem %s3, %s411
      $region44: #{residual_layer_forward.2} parent=39 // pred_fallthru
        _
    $region40: #{residual_layer_forward.2} parent=5 // pred_fallthru
      _
  $region6: #{residual_layer_forward.2} parent=0 // loop_footer
    %s13 = sadd.s32 1, %s9
  $region7: #{residual_layer_forward.2} parent=0 // loop_footer_branch
    %8 = sbr.rel target = $region3
  $region8: #{residual_layer_forward.2} parent=0 // loop_exit
    _

// kernel: residual_layer_forward.3
$region0: #{residual_layer_forward.3}
  #allocation0 [shape = 'u32[]', space=smem, size = 0x4, offset = 0x4, fixed_abs, tag = 'smem constant byte address 0x4 - core index']
  #allocation1 [shape = 'u32[144,128]{1,0:T(1,128)}', space=vmem, size = 0x12000, scoped, tag = 'internal scratch']
  %s0 = inlined_call_operand.vmem [shape: bf16[128,128], index: 0, kind: input, shape index: {}]
  %s1 = inlined_call_operand.vmem [shape: bf16[128,128], index: 1, kind: input, shape index: {}]
  %s2 = inlined_call_operand.vmem [shape: f32[1,128], index: 2, kind: input, shape index: {}]
  %s3 = inlined_call_operand.vmem [shape: f32[128,128], index: 3, kind: output, shape index: {}]
  %s4 = sld [smem:[#allocation0]]
  $region45: #{residual_layer_forward.3} parent=0
    _
  %s6 = ssub.s32 1, %s4
  %s7 = scalar_select 0, %s6, %s4
  loop: start=0, step=1, limit=4
  $region2: #{residual_layer_forward.3} parent=0 // loop_pre_header
    _
  $region3: #{residual_layer_forward.3} parent=0 // loop_header
    %s9 = sphi 0, %s13
    %p10 = scmp.ge.s32.totalorder %s9, 4
    %s19 = sphi 0, %s21
    %s22 = sphi 0, %s19
    %s23 = sphi 0, %s22
    %s39 = sphi 0, %s23
    %s43 = sphi 0, %s43
    %s45 = sphi 0, %s43
    %s46 = sphi 0, %s45
    %s60 = sphi 0, %s46
    %s64 = sphi 0, %s64
    %s66 = sphi 0, %s64
    %s67 = sphi 0, %s66
    %s81 = sphi 0, %s67
    %s87 = sphi 0, %s89
    %s90 = sphi 0, %s87
    %s91 = sphi 0, %s90
    %s107 = sphi 0, %s91
  $region4: #{residual_layer_forward.3} parent=0 // loop_header_branch
    %12 = sbr.rel (%p10) target = $region8
  $region5: #{residual_layer_forward.3} parent=0 // loop_body
    %s14 = ssub.s32 %s9, 1
    %s15 = ssub.s32 %s9, 2
    %s16 = sadd.s32 %s9, 1
    %s17 = ssub.s32 %s9, %s16
    %p18 = scmp.eq.s32.totalorder %s17, 0
    %s20 = sadd.s32 %s19, 1
    %s21 = scalar_select %p18, %s19, %s20
    %p24 = pneg %p18
    %p25 = scmp.eq.s32.totalorder %s9, 1
    %p26 = por %p24, %p25
    %p27 = scmp.ne.s32.totalorder %s19, %s22
    %p28 = scmp.eq.s32.totalorder %s9, 0
    %p29 = por %p27, %p28
    %p30 = scmp.ne.s32.totalorder %s19, %s22
    %p31 = scmp.eq.s32.totalorder %s14, 1
    %p32 = por %p30, %p31
    %p33 = scmp.ne.s32.totalorder %s22, %s23
    %p34 = scmp.eq.s32.totalorder %s14, 0
    %p35 = por %p33, %p34
    %p36 = scmp.ne.s32.totalorder %s22, %s23
    %p37 = scmp.eq.s32.totalorder %s15, 1
    %p38 = por %p36, %p37
    %p40 = scmp.ne.s32.totalorder %s23, %s39
    %p41 = scmp.eq.s32.totalorder %s15, 0
    %p42 = por %p40, %p41
    %s44 = sadd.s32 %s43, 1
    %p47 = scmp.eq.s32.totalorder %s9, 1
    %p48 = scmp.ne.s32.totalorder %s43, %s45
    %p49 = scmp.eq.s32.totalorder %s9, 0
    %p50 = por %p48, %p49
    %p51 = scmp.ne.s32.totalorder %s43, %s45
    %p52 = scmp.eq.s32.totalorder %s14, 1
    %p53 = por %p51, %p52
    %p54 = scmp.ne.s32.totalorder %s45, %s46
    %p55 = scmp.eq.s32.totalorder %s14, 0
    %p56 = por %p54, %p55
    %p57 = scmp.ne.s32.totalorder %s45, %s46
    %p58 = scmp.eq.s32.totalorder %s15, 1
    %p59 = por %p57, %p58
    %p61 = scmp.ne.s32.totalorder %s46, %s60
    %p62 = scmp.eq.s32.totalorder %s15, 0
    %p63 = por %p61, %p62
    %s65 = sadd.s32 %s64, 1
    %p68 = scmp.eq.s32.totalorder %s9, 1
    %p69 = scmp.ne.s32.totalorder %s64, %s66
    %p70 = scmp.eq.s32.totalorder %s9, 0
    %p71 = por %p69, %p70
    %p72 = scmp.ne.s32.totalorder %s64, %s66
    %p73 = scmp.eq.s32.totalorder %s14, 1
    %p74 = por %p72, %p73
    %p75 = scmp.ne.s32.totalorder %s66, %s67
    %p76 = scmp.eq.s32.totalorder %s14, 0
    %p77 = por %p75, %p76
    %p78 = scmp.ne.s32.totalorder %s66, %s67
    %p79 = scmp.eq.s32.totalorder %s15, 1
    %p80 = por %p78, %p79
    %p82 = scmp.ne.s32.totalorder %s67, %s81
    %p83 = scmp.eq.s32.totalorder %s15, 0
    %p84 = por %p82, %p83
    %s85 = ssub.s32 %s9, %s16
    %p86 = scmp.eq.s32.totalorder %s85, 0
    %s88 = sadd.s32 %s87, 1
    %s89 = scalar_select %p86, %s87, %s88
    %p92 = pneg %p86
    %p93 = scmp.eq.s32.totalorder %s9, 1
    %p94 = por %p92, %p93
    %p95 = scmp.ne.s32.totalorder %s87, %s90
    %p96 = scmp.eq.s32.totalorder %s9, 0
    %p97 = por %p95, %p96
    %p98 = scmp.ne.s32.totalorder %s87, %s90
    %p99 = scmp.eq.s32.totalorder %s14, 1
    %p100 = por %p98, %p99
    %p101 = scmp.ne.s32.totalorder %s90, %s91
    %p102 = scmp.eq.s32.totalorder %s14, 0
    %p103 = por %p101, %p102
    %p104 = scmp.ne.s32.totalorder %s90, %s91
    %p105 = scmp.eq.s32.totalorder %s15, 1
    %p106 = por %p104, %p105
    %p108 = scmp.ne.s32.totalorder %s91, %s107
    %p109 = scmp.eq.s32.totalorder %s15, 0
    %p110 = por %p108, %p109
    %p111 = scmp.le.s32.totalorder 1, %s9
    %p112 = scmp.lt.s32.totalorder %s9, 3
    %p113 = pnand %p111, %p112
    %p114 = pneg %p113
    // Predicated region
    $region9: #{residual_layer_forward.3} parent=5 // pred_check
      _
    $region10: #{residual_layer_forward.3} parent=5 // pred_check_branch
      %116 = sbr.rel (%p113) target = $region12
    $region11: #{residual_layer_forward.3} parent=5 // pred_region
      %s117 = ssub.s32 %s9, 1
      // Predicated region
      $region13: #{residual_layer_forward.3} parent=11 // pred_check
        %p118 = pneg %p56
      $region14: #{residual_layer_forward.3} parent=11 // pred_check_branch
        %120 = sbr.rel (%p118) target = $region16
      $region15: #{residual_layer_forward.3} parent=11 // pred_region
        _
      $region16: #{residual_layer_forward.3} parent=11 // pred_fallthru
        _
      // Predicated region
      $region17: #{residual_layer_forward.3} parent=11 // pred_check
        %p121 = pneg %p77
      $region18: #{residual_layer_forward.3} parent=11 // pred_check_branch
        %123 = sbr.rel (%p121) target = $region20
      $region19: #{residual_layer_forward.3} parent=11 // pred_region
        _
      $region20: #{residual_layer_forward.3} parent=11 // pred_fallthru
        _
    $region12: #{residual_layer_forward.3} parent=5 // pred_fallthru
      _
    %p124 = scmp.lt.s32.totalorder %s9, 2
    // Predicated region
    $region21: #{residual_layer_forward.3} parent=5 // pred_check
      %p125 = pneg %p124
    $region22: #{residual_layer_forward.3} parent=5 // pred_check_branch
      %127 = sbr.rel (%p125) target = $region24
    $region23: #{residual_layer_forward.3} parent=5 // pred_region
      // Predicated region
      $region25: #{residual_layer_forward.3} parent=23 // pred_check
        %p128 = pneg %p29
      $region26: #{residual_layer_forward.3} parent=23 // pred_check_branch
        %130 = sbr.rel (%p128) target = $region28
      $region27: #{residual_layer_forward.3} parent=23 // pred_region
        %s131 = smul.u32 8, %s9
        %p132 = scmp.lt.s32.totalorder %s131, 15
        %s133 = scalar_select %p132, %s131, 15
        %s134 = smul.addr %s133, 4
        %s135 = scalar_lea.vmem %s0, %s134
        %s136 = smul.u32 8, %s9
      $region28: #{residual_layer_forward.3} parent=23 // pred_fallthru
        _
    $region24: #{residual_layer_forward.3} parent=5 // pred_fallthru
      _
    %p137 = scmp.le.s32.totalorder 1, %s9
    %p138 = scmp.lt.s32.totalorder %s9, 3
    %p139 = pnand %p137, %p138
    %p140 = pneg %p139
    // Predicated region
    $region29: #{residual_layer_forward.3} parent=5 // pred_check
      _
    $region30: #{residual_layer_forward.3} parent=5 // pred_check_branch
      %142 = sbr.rel (%p139) target = $region32
    $region31: #{residual_layer_forward.3} parent=5 // pred_region
      %s143 = ssub.s32 %s9, 1
      %s144 = smul.u32 8, %s14
      %p145 = scmp.lt.s32.totalorder %s144, 15
      %s146 = scalar_select %p145, %s144, 15
      %s147 = smul.addr %s146, 4
      %s148 = scalar_lea.vmem %s0, %s147
      %p149 = pneg %p35
      %p150 = pneg %p32
      %p151 = pneg %p56
      %p152 = pneg %p53
      %p153 = pneg %p77
      %p154 = pneg %p74
      %p155 = pneg %p103
      %p156 = pneg %p100
      %s157 = smul.u32 8, %s14
      %p158 = scmp.lt.s32.totalorder %s157, 15
      %s159 = scalar_select %p158, %s157, 15
      %s160 = smul.addr %s159, 8
      %s161 = scalar_lea.vmem %s3, %s160
      %s162 = smul.u32 8, %s14
      %p163 = scmp.lt.s32.totalorder %s162, 15
      %s164 = scalar_select %p163, %s162, 15
      %s165 = smul.addr %s164, 4
      %s166 = scalar_lea.vmem %s0, %s165
      %s167 = smul.u32 8, %s14
      %s168 = smul.u32 8, %s14
      %p169 = scmp.lt.s32.totalorder %s168, 15
      %s170 = scalar_select %p169, %s168, 15
      %s171 = smul.addr %s170, 8
      %s172 = scalar_lea.vmem %s3, %s171
      %s173 = smul.u32 8, %s14
      %v175 = vld [vmem:[%s166] sm:$0xf]
      %v176 = vld [vmem:[%s166 + $0x4] sm:$0xf]
      %v177 = vld [vmem:[%s166 + $0x8] sm:$0xf]
      %v178 = vld [vmem:[%s166 + $0xc] sm:$0xf]
      %v179 = vld [vmem:[%s166 + $0x10] sm:$0xf]
      %v180 = vld [vmem:[%s166 + $0x14] sm:$0xf]
      %v181 = vld [vmem:[%s166 + $0x18] sm:$0xf]
      %v182 = vld [vmem:[%s166 + $0x1c] sm:$0xf]
      %v183 = vld [vmem:[%s1] sm:$0xf]
      %v184 = vld [vmem:[%s1 + $0x4] sm:$0xf]
      %v185 = vld [vmem:[%s1 + $0x8] sm:$0xf]
      %v186 = vld [vmem:[%s1 + $0xc] sm:$0xf]
      %v187 = vld [vmem:[%s1 + $0x10] sm:$0xf]
      %v188 = vld [vmem:[%s1 + $0x14] sm:$0xf]
      %v189 = vld [vmem:[%s1 + $0x18] sm:$0xf]
      %v190 = vld [vmem:[%s1 + $0x1c] sm:$0xf]
      %v191 = vld [vmem:[%s1 + $0x20] sm:$0xf]
      %v192 = vld [vmem:[%s1 + $0x24] sm:$0xf]
      %v193 = vld [vmem:[%s1 + $0x28] sm:$0xf]
      %v194 = vld [vmem:[%s1 + $0x2c] sm:$0xf]
      %v195 = vld [vmem:[%s1 + $0x30] sm:$0xf]
      %v196 = vld [vmem:[%s1 + $0x34] sm:$0xf]
      %v197 = vld [vmem:[%s1 + $0x38] sm:$0xf]
      %v198 = vld [vmem:[%s1 + $0x3c] sm:$0xf]
      %v199 = vld [vmem:[%s2] sm:$0x1]
      %v201 = vlaneseq
      %v202 = vshrl.u32 %v201, 7
      %v203 = vsub.s32 0, %v202
      %v204 = vrot.slane %v199, %v203
      %v214 = vunpack.c.l.b16 %v175
      %v215 = vunpack.c.l.b16 %v176
      %v216 = vunpack.c.l.b16 %v177
      %v217 = vunpack.c.l.b16 %v178
      %v218 = vunpack.c.l.b16 %v179
      %v219 = vunpack.c.l.b16 %v180
      %v220 = vunpack.c.l.b16 %v181
      %v221 = vunpack.c.l.b16 %v182
      %v222 = vpack.c.b16 %v215, %v214
      %v223 = vpack.c.b16 %v217, %v216
      %v224 = vpack.c.b16 %v219, %v218
      %v225 = vpack.c.b16 %v221, %v220
      %v246 = vunpack.c.l.b16 %v183
      %v247 = vunpack.c.l.b16 %v184
      %v248 = vunpack.c.l.b16 %v185
      %v249 = vunpack.c.l.b16 %v186
      %v250 = vunpack.c.l.b16 %v187
      %v251 = vunpack.c.l.b16 %v188
      %v252 = vunpack.c.l.b16 %v189
      %v253 = vunpack.c.l.b16 %v190
      %v254 = vunpack.c.l.b16 %v191
      %v255 = vunpack.c.l.b16 %v192
      %v256 = vunpack.c.l.b16 %v193
      %v257 = vunpack.c.l.b16 %v194
      %v258 = vunpack.c.l.b16 %v195
      %v259 = vunpack.c.l.b16 %v196
      %v260 = vunpack.c.l.b16 %v197
      %v261 = vunpack.c.l.b16 %v198
      %v262 = vpack.c.b16 %v247, %v246
      %v263 = vpack.c.b16 %v249, %v248
      %v264 = vpack.c.b16 %v251, %v250
      %v265 = vpack.c.b16 %v253, %v252
      %v266 = vpack.c.b16 %v255, %v254
      %v267 = vpack.c.b16 %v257, %v256
      %v268 = vpack.c.b16 %v259, %v258
      %v269 = vpack.c.b16 %v261, %v260
      %278 = vmatprep.subr.bf16.mxu0 0
      %279 = vmatpush1.bf16.msra.mxu0 %v262
      %280 = vmatprep.subr.bf16.mxu0 0
      %281 = vmatpush1.bf16.msra.mxu0 %v263
      %282 = vmatprep.subr.bf16.mxu0 0
      %283 = vmatpush1.bf16.msra.mxu0 %v264
      %284 = vmatprep.subr.bf16.mxu0 0
      %285 = vmatpush1.bf16.msra.mxu0 %v265
      %286 = vmatprep.subr.bf16.mxu0 0
      %287 = vmatpush1.bf16.msra.mxu0 %v266
      %288 = vmatprep.subr.bf16.mxu0 0
      %289 = vmatpush1.bf16.msra.mxu0 %v267
      %290 = vmatprep.subr.bf16.mxu0 0
      %291 = vmatpush1.bf16.msra.mxu0 %v268
      %292 = vmatprep.subr.bf16.mxu0 0
      %293 = vmatpush1.bf16.msra.mxu0 %v269
      %294 = vmatprep.subr.bf16.mxu0 0
      %295 = vmatpush1.bf16.msra.mxu0 0
      %296 = vmatprep.subr.bf16.mxu0 0
      %297 = vmatpush1.bf16.msra.mxu0 0
      %298 = vmatprep.subr.bf16.mxu0 0
      %299 = vmatpush1.bf16.msra.mxu0 0
      %300 = vmatprep.subr.bf16.mxu0 0
      %301 = vmatpush1.bf16.msra.mxu0 0
      %302 = vmatprep.subr.bf16.mxu0 0
      %303 = vmatpush1.bf16.msra.mxu0 0
      %304 = vmatprep.subr.bf16.mxu0 0
      %305 = vmatpush1.bf16.msra.mxu0 0
      %306 = vmatprep.subr.bf16.mxu0 0
      %307 = vmatpush1.bf16.msra.mxu0 0
      %308 = vmatprep.subr.bf16.mxu0 0
      %309 = vmatpush1.bf16.msra.mxu0 0
      %310 = vmatprep.mubr.bf16.mxu0 0
      %311 = vmatmul.mubr.bf16.gmra.mrb[0].mxu0 %v222
      %v312 = vpop.f32.mrb[0].mxu0
      %v313 = vadd.f32 %v204, %v312
      %v314 = vpop.f32.mrb[0].mxu0
      %v315 = vpop.f32.mrb[0].mxu0
      %v316 = vadd.f32 %v204, %v315
      %v317 = vpop.f32.mrb[0].mxu0
      %318 = vmatprep.mubr.bf16.mxu0 0
      %319 = vmatmul.mubr.bf16.gmra.mrb[0].mxu0 %v223
      %v320 = vpop.f32.mrb[0].mxu0
      %v321 = vadd.f32 %v204, %v320
      %v322 = vpop.f32.mrb[0].mxu0
      %v323 = vpop.f32.mrb[0].mxu0
      %v324 = vadd.f32 %v204, %v323
      %v325 = vpop.f32.mrb[0].mxu0
      %326 = vmatprep.mubr.bf16.mxu0 0
      %327 = vmatmul.mubr.bf16.gmra.mrb[0].mxu0 %v224
      %v328 = vpop.f32.mrb[0].mxu0
      %v329 = vadd.f32 %v204, %v328
      %v330 = vpop.f32.mrb[0].mxu0
      %v331 = vpop.f32.mrb[0].mxu0
      %v332 = vadd.f32 %v204, %v331
      %v333 = vpop.f32.mrb[0].mxu0
      %334 = vmatprep.mubr.bf16.mxu0 0
      %335 = vmatmul.mubr.bf16.gmra.mrb[0].mxu0 %v225
      %v336 = vpop.f32.mrb[0].mxu0
      %v337 = vadd.f32 %v204, %v336
      %v338 = vpop.f32.mrb[0].mxu0
      %v339 = vpop.f32.mrb[0].mxu0
      %v340 = vadd.f32 %v204, %v339
      %v341 = vpop.f32.mrb[0].mxu0
      %342 = vdwg.mxu0
      %v343 = vmax.f32 %v313, 0.0
      %v344 = vmax.f32 %v316, 0.0
      %v345 = vmax.f32 %v321, 0.0
      %v346 = vmax.f32 %v324, 0.0
      %v347 = vmax.f32 %v329, 0.0
      %v348 = vmax.f32 %v332, 0.0
      %v349 = vmax.f32 %v337, 0.0
      %v350 = vmax.f32 %v340, 0.0
      %351 = vst [vmem:[%s172] sm:$0xff] %v343
      %352 = vst [vmem:[%s172 + $0x8] sm:$0xff] %v344
      %353 = vst [vmem:[%s172 + $0x10] sm:$0xff] %v345
      %354 = vst [vmem:[%s172 + $0x18] sm:$0xff] %v346
      %355 = vst [vmem:[%s172 + $0x20] sm:$0xff] %v347
      %356 = vst [vmem:[%s172 + $0x28] sm:$0xff] %v348
      %357 = vst [vmem:[%s172 + $0x30] sm:$0xff] %v349
      %358 = vst [vmem:[%s172 + $0x38] sm:$0xff] %v350
      %s359 = smul.u32 8, %s14
      %p360 = scmp.lt.s32.totalorder %s359, 15
      %s361 = scalar_select %p360, %s359, 15
      %s362 = smul.addr %s361, 8
      %s363 = scalar_lea.vmem %s3, %s362
      // Predicated region
      $region33: #{residual_layer_forward.3} parent=31 // pred_check
        %p364 = pneg %p100
      $region34: #{residual_layer_forward.3} parent=31 // pred_check_branch
        %366 = sbr.rel (%p364) target = $region36
      $region35: #{residual_layer_forward.3} parent=31 // pred_region
        %s367 = smul.u32 8, %s14
      $region36: #{residual_layer_forward.3} parent=31 // pred_fallthru
        _
    $region32: #{residual_layer_forward.3} parent=5 // pred_fallthru
      _
    %p368 = scmp.le.s32.totalorder 2, %s9
    // Predicated region
    $region37: #{residual_layer_forward.3} parent=5 // pred_check
      %p369 = pneg %p368
    $region38: #{residual_layer_forward.3} parent=5 // pred_check_branch
      %371 = sbr.rel (%p369) target = $region40
    $region39: #{residual_layer_forward.3} parent=5 // pred_region
      %s372 = ssub.s32 %s9, 2
      // Predicated region
      $region41: #{residual_layer_forward.3} parent=39 // pred_check
        %p373 = pneg %p106
      $region42: #{residual_layer_forward.3} parent=39 // pred_check_branch
        %375 = sbr.rel (%p373) target = $region44
      $region43: #{residual_layer_forward.3} parent=39 // pred_region
        %s376 = smul.u32 8, %s15
        %p377 = scmp.lt.s32.totalorder %s376, 15
        %s378 = scalar_select %p377, %s376, 15
        %s379 = smul.addr %s378, 8
        %s380 = scalar_lea.vmem %s3, %s379
      $region44: #{residual_layer_forward.3} parent=39 // pred_fallthru
        _
    $region40: #{residual_layer_forward.3} parent=5 // pred_fallthru
      _
  $region6: #{residual_layer_forward.3} parent=0 // loop_footer
    %s13 = sadd.s32 1, %s9
  $region7: #{residual_layer_forward.3} parent=0 // loop_footer_branch
    %8 = sbr.rel target = $region3
  $region8: #{residual_layer_forward.3} parent=0 // loop_exit
    _

</llo_original>
